<compile_context>
chip_gen: v7x
topology: tpu7x:2x2x1
jax: 0.10.0
libtpu: 0.0.40
codegen_flags: <defaults>
</compile_context>

<pallas_src>
import functools

import jax
import jax.numpy as jnp
from jax.experimental import pallas as pl
from jax.experimental.pallas import tpu as pltpu


def _round_up(x, m):
    return ((x + m - 1) // m) * m


# ----------------------------------------------------------------------------
# Kernel 1: one Controller.forward() step (LSTMCell + decoder + temp/tanh)
# ----------------------------------------------------------------------------
def _controller_step_kernel(x_ref, hx_ref, cx_ref, w_ih_ref, w_hh_ref, b_ref,
                            w_dec_ref, b_dec_ref,
                            logits_ref, hx_out_ref, cx_out_ref,
                            *, tanh_c, apply_tanh):
    Hp = hx_ref.shape[-1]

    x = x_ref[...]
    hx = hx_ref[...]
    cx = cx_ref[...]

    # (B, 4*Hp) = x @ W_ih + hx @ W_hh + (b_ih + b_hh)          (MXU matmuls)
    gates = (jnp.dot(x, w_ih_ref[...], preferred_element_type=jnp.float32)
             + jnp.dot(hx, w_hh_ref[...], preferred_element_type=jnp.float32)
             + b_ref[...])

    # Gate slices fall on 128-lane boundaries (Hp is a multiple of 128).
    i_g = jax.nn.sigmoid(gates[:, 0 * Hp:1 * Hp])
    f_g = jax.nn.sigmoid(gates[:, 1 * Hp:2 * Hp])
    g_g = jnp.tanh(gates[:, 2 * Hp:3 * Hp])
    o_g = jax.nn.sigmoid(gates[:, 3 * Hp:4 * Hp])

    cx_new = f_g * cx + i_g * g_g
    hx_new = o_g * jnp.tanh(cx_new)

    # Decoder: 1/softmax_temperature is pre-folded; output is lane dense (Vp).
    logits = (jnp.dot(hx_new, w_dec_ref[...], preferred_element_type=jnp.float32)
              + b_dec_ref[...])
    if apply_tanh:  # mode == 'train'
        logits = jnp.float32(tanh_c) * jnp.tanh(logits)

    logits_ref[...] = logits
    hx_out_ref[...] = hx_new
    cx_out_ref[...] = cx_new


@functools.partial(jax.jit, static_argnames=("tanh_c", "apply_tanh"),
                   donate_argnums=(1, 2))
def controller_step_pallas(embed, hx, cx, w_ih_t, w_hh_t, b, w_dec_t, b_dec,
                           *, tanh_c, apply_tanh):
    B, Hp = hx.shape
    Vp = w_dec_t.shape[1]
    kernel = functools.partial(_controller_step_kernel,
                               tanh_c=tanh_c, apply_tanh=apply_tanh)
    vmem = pl.BlockSpec(memory_space=pltpu.MemorySpace.VMEM)
    return pl.pallas_call(
        kernel,
        out_shape=(jax.ShapeDtypeStruct((B, Vp), jnp.float32),
                   jax.ShapeDtypeStruct((B, Hp), jnp.float32),
                   jax.ShapeDtypeStruct((B, Hp), jnp.float32)),
        in_specs=[vmem] * 8,
        out_specs=(vmem, vmem, vmem),
        input_output_aliases={1: 1, 2: 2},   # hx/cx ping-pong in place
    )(embed, hx, cx, w_ih_t, w_hh_t, b, w_dec_t, b_dec)


# ----------------------------------------------------------------------------
# Kernel 2: fused rollout — all sample() forward steps in one pallas_call
# ----------------------------------------------------------------------------
def _controller_rollout_kernel(tok_ref,                    # SMEM (S, B) int32
                               hx0_ref, cx0_ref,           # (B, Hp)
                               enc_ref,                    # (T, Hp)
                               w_ih_ref, w_hh_ref,         # (Hp, 4*Hp)
                               b_ref,                      # (1, 4*Hp)
                               w_dec_ref,                  # (1, Hp, Vp)  per step
                               b_dec_ref,                  # (1, 1, Vp)   per step
                               logits_ref,                 # (1, B, Vp)   per step
                               hx_out_ref, cx_out_ref,     # (B, Hp)
                               hx_s, cx_s,                 # VMEM scratch (B, Hp)
                               *, tanh_c, apply_tanh):
    s = pl.program_id(0)
    Hp = hx0_ref.shape[-1]
    B = hx0_ref.shape[0]
    T = enc_ref.shape[0]

    @pl.when(s == 0)
    def _():
        hx_s[...] = hx0_ref[...]
        cx_s[...] = cx0_ref[...]

    # In-kernel embedding gather: one_hot(token) @ encoder (exact, MXU).
    # Step 0 uses the appended all-zero encoder row == static zero input.
    iota = jax.lax.broadcasted_iota(jnp.int32, (1, T), 1)
    rows = [(iota == tok_ref[s, bi]).astype(jnp.float32) for bi in range(B)]
    onehot = jnp.concatenate(rows, axis=0)                        # (B, T)
    x = jnp.dot(onehot, enc_ref[...], preferred_element_type=jnp.float32)

    hx = hx_s[...]
    cx = cx_s[...]
    gates = (jnp.dot(x, w_ih_ref[...], preferred_element_type=jnp.float32)
             + jnp.dot(hx, w_hh_ref[...], preferred_element_type=jnp.float32)
             + b_ref[...])
    i_g = jax.nn.sigmoid(gates[:, 0 * Hp:1 * Hp])
    f_g = jax.nn.sigmoid(gates[:, 1 * Hp:2 * Hp])
    g_g = jnp.tanh(gates[:, 2 * Hp:3 * Hp])
    o_g = jax.nn.sigmoid(gates[:, 3 * Hp:4 * Hp])
    cx_new = f_g * cx + i_g * g_g
    hx_new = o_g * jnp.tanh(cx_new)
    hx_s[...] = hx_new
    cx_s[...] = cx_new

    logits = (jnp.dot(hx_new, w_dec_ref[0], preferred_element_type=jnp.float32)
              + b_dec_ref[0])
    if apply_tanh:
        logits = jnp.float32(tanh_c) * jnp.tanh(logits)
    logits_ref[0] = logits

    @pl.when(s == pl.num_programs(0) - 1)
    def _():
        hx_out_ref[...] = hx_new
        cx_out_ref[...] = cx_new


@functools.partial(jax.jit, static_argnames=("tanh_c", "apply_tanh"))
def controller_rollout_pallas(tokens, hx0, cx0, enc, w_ih_t, w_hh_t, b,
                              w_dec_stack, b_dec_stack, *, tanh_c, apply_tanh):
    num_steps, B = tokens.shape
    T, Hp = enc.shape
    Vp = w_dec_stack.shape[-1]
    kernel = functools.partial(_controller_rollout_kernel,
                               tanh_c=tanh_c, apply_tanh=apply_tanh)
    grid_spec = pltpu.PrefetchScalarGridSpec(
        num_scalar_prefetch=1,                 # token ids -> SMEM
        grid=(num_steps,),
        in_specs=[
            pl.BlockSpec((B, Hp), lambda s, tok: (0, 0)),          # hx0
            pl.BlockSpec((B, Hp), lambda s, tok: (0, 0)),          # cx0
            pl.BlockSpec((T, Hp), lambda s, tok: (0, 0)),          # encoder
            pl.BlockSpec((Hp, 4 * Hp), lambda s, tok: (0, 0)),     # w_ih
            pl.BlockSpec((Hp, 4 * Hp), lambda s, tok: (0, 0)),     # w_hh
            pl.BlockSpec((1, 4 * Hp), lambda s, tok: (0, 0)),      # bias
            pl.BlockSpec((1, Hp, Vp), lambda s, tok: (s, 0, 0)),   # decoder W[s]
            pl.BlockSpec((1, 1, Vp), lambda s, tok: (s, 0, 0)),    # decoder b[s]
        ],
        out_specs=[
            pl.BlockSpec((1, B, Vp), lambda s, tok: (s, 0, 0)),    # logits (lane dense)
            pl.BlockSpec((B, Hp), lambda s, tok: (0, 0)),          # final hx
            pl.BlockSpec((B, Hp), lambda s, tok: (0, 0)),          # final cx
        ],
        scratch_shapes=[pltpu.VMEM((B, Hp), jnp.float32),
                        pltpu.VMEM((B, Hp), jnp.float32)],
    )
    return pl.pallas_call(
        kernel,
        grid_spec=grid_spec,
        out_shape=(jax.ShapeDtypeStruct((num_steps, B, Vp), jnp.float32),
                   jax.ShapeDtypeStruct((B, Hp), jnp.float32),
                   jax.ShapeDtypeStruct((B, Hp), jnp.float32)),
        compiler_params=pltpu.CompilerParams(
            dimension_semantics=("arbitrary",)),   # recurrent over steps
    )(tokens, hx0, cx0, enc, w_ih_t, w_hh_t, b, w_dec_stack, b_dec_stack)


# ----------------------------------------------------------------------------
# Controller module: parameter setup + padding/folding + glue
# ----------------------------------------------------------------------------
class ControllerPallas:
    def __init__(self, key, *, num_blocks, shared_rnn_activations,
                 controller_hid, softmax_temperature, tanh_c, mode):
        self.num_blocks = num_blocks
        self.func_names = shared_rnn_activations
        self.controller_hid = controller_hid
        self.softmax_temperature = float(softmax_temperature)
        self.tanh_c = float(tanh_c)
        self.mode = mode

        # num_tokens exactly as the 'rnn' branch of the PyTorch __init__.
        self.num_tokens = [len(shared_rnn_activations)]
        for idx in range(num_blocks):
            self.num_tokens += [idx + 1, len(shared_rnn_activations)]
        num_total_tokens = sum(self.num_tokens)
        self.num_total_tokens = num_total_tokens

        H = controller_hid
        Hp = _round_up(H, 128)                      # lane-aligned gates
        Vp = _round_up(max(self.num_tokens), 128)   # lane-dense logits
        self.Hp, self.Vp = Hp, Vp
        self.zero_token = num_total_tokens          # all-zero encoder row (step 0)
        Tp = _round_up(num_total_tokens + 1, 8)

        init_range = 0.1
        keys = jax.random.split(key, 5 + len(self.num_tokens))

        def uni(k, shape):
            return jax.random.uniform(k, shape, minval=-init_range,
                                      maxval=init_range, dtype=jnp.float32)

        # ------- unpadded "PyTorch" parameters (kept for the reference) -----
        self.encoder = uni(keys[0], (num_total_tokens, H))   # Embedding
        self.w_ih = uni(keys[1], (4 * H, H))                 # LSTMCell weights
        self.w_hh = uni(keys[2], (4 * H, H))
        self.b_ih = uni(keys[3], (4 * H,))
        self.b_hh = uni(keys[4], (4 * H,))
        self.dec_w = []                                      # Linear (V, H)
        self.dec_b = []
        for i, size in enumerate(self.num_tokens):
            self.dec_w.append(uni(keys[5 + i], (size, H)))
            self.dec_b.append(jnp.zeros((size,), jnp.float32))

        # ------- padded / pre-transposed / pre-folded kernel parameters -----
        inv_t = 1.0 / self.softmax_temperature

        def pack_gate_w(w):   # (4H, H) -> (Hp, 4*Hp) with lane-aligned gates
            chunks = []
            for g in range(4):
                wg = w[g * H:(g + 1) * H, :].T               # (H, H) in -> out
                chunks.append(jnp.pad(wg, ((0, Hp - H), (0, Hp - H))))
            return jnp.concatenate(chunks, axis=1)

        def pack_gate_b(b):   # (4H,) -> (1, 4*Hp)
            chunks = [jnp.pad(b[g * H:(g + 1) * H], (0, Hp - H))
                      for g in range(4)]
            return jnp.concatenate(chunks)[None, :]

        self.w_ih_t = pack_gate_w(self.w_ih)
        self.w_hh_t = pack_gate_w(self.w_hh)
        self.b_gates = pack_gate_b(self.b_ih + self.b_hh)    # pre-summed biases

        # Encoder padded to (Tp, Hp); rows >= num_total_tokens are zero.
        self.encoder_pad = jnp.pad(
            self.encoder, ((0, Tp - num_total_tokens), (0, Hp - H)))

        # Decoders: transpose, fold 1/softmax_temperature, pad to (Hp, Vp).
        dec_w_pad, dec_b_pad = [], []
        for i, size in enumerate(self.num_tokens):
            wd = jnp.pad(self.dec_w[i].T * inv_t, ((0, Hp - H), (0, Vp - size)))
            bd = jnp.pad(self.dec_b[i] * inv_t, (0, Vp - size))[None, :]
            dec_w_pad.append(wd)
            dec_b_pad.append(bd)
        self.dec_w_pad = dec_w_pad                  # list of (Hp, Vp)
        self.dec_b_pad = dec_b_pad                  # list of (1, Vp)
        self.dec_w_stack = jnp.stack(dec_w_pad)     # (n_dec, Hp, Vp)
        self.dec_b_stack = jnp.stack(dec_b_pad)     # (n_dec, 1, Vp)

    # -- PyTorch-API helpers -------------------------------------------------
    def init_hidden(self, batch_size):
        z = jnp.zeros((batch_size, self.controller_hid), jnp.float32)
        return (z, z)

    def static_input(self, batch_size):
        return jnp.zeros((batch_size, self.controller_hid), jnp.float32)

    def _pad_h(self, a):
        return jnp.pad(a.astype(jnp.float32),
                       ((0, 0), (0, self.Hp - a.shape[1])))

    # -- Controller.forward (single step) -------------------------------------
    def forward(self, inputs, hidden, block_idx, is_embed):
        if not is_embed:
            embed = jnp.take(self.encoder_pad, inputs, axis=0)    # (B, Hp)
        else:
            embed = self._pad_h(inputs)
        hx, cx = hidden
        logits_p, hx_p, cx_p = controller_step_pallas(
            embed, self._pad_h(hx), self._pad_h(cx),
            self.w_ih_t, self.w_hh_t, self.b_gates,
            self.dec_w_pad[block_idx], self.dec_b_pad[block_idx],
            tanh_c=self.tanh_c, apply_tanh=(self.mode == "train"))
        H = self.controller_hid
        V = self.num_tokens[block_idx]
        return logits_p[:, :V], (hx_p[:, :H], cx_p[:, :H])

    # -- Fused rollout: all 2*num_blocks-1 forward() steps of sample() --------
    # step_tokens: (num_steps-1, B) int32 token ids fed at steps 1..N-1
    # (teacher-forced; step 0 always uses the static zero input, as sample()).
    def forward_rollout(self, step_tokens):
        num_steps = 2 * (self.num_blocks - 1) + 1
        assert step_tokens.shape[0] == num_steps - 1
        B = step_tokens.shape[1]
        tokens = jnp.concatenate(
            [jnp.full((1, B), self.zero_token, jnp.int32),
             step_tokens.astype(jnp.int32)], axis=0)              # (num_steps, B)
        hx0 = jnp.zeros((B, self.Hp), jnp.float32)
        cx0 = jnp.zeros((B, self.Hp), jnp.float32)
        logits_p, hx_p, cx_p = controller_rollout_pallas(
            tokens, hx0, cx0, self.encoder_pad,
            self.w_ih_t, self.w_hh_t, self.b_gates,
            self.dec_w_stack, self.dec_b_stack,
            tanh_c=self.tanh_c, apply_tanh=(self.mode == "train"))
        H = self.controller_hid
        return logits_p, (hx_p[:, :H], cx_p[:, :H])


# ----------------------------------------------------------------------------
# Pure-JAX reference (unpadded math) for correctness checking
# ----------------------------------------------------------------------------
def _reference_forward(ctrl, embed, hx, cx, block_idx):
    gates = embed @ ctrl.w_ih.T + ctrl.b_ih + hx @ ctrl.w_hh.T + ctrl.b_hh
    H = ctrl.controller_hid
    i_g = jax.nn.sigmoid(gates[:, :H])
    f_g = jax.nn.sigmoid(gates[:, H:2 * H])
    g_g = jnp.tanh(gates[:, 2 * H:3 * H])
    o_g = jax.nn.sigmoid(gates[:, 3 * H:])
    cxn = f_g * cx + i_g * g_g
    hxn = o_g * jnp.tanh(cxn)
    logits = hxn @ ctrl.dec_w[block_idx].T + ctrl.dec_b[block_idx]
    logits = logits / ctrl.softmax_temperature
    if ctrl.mode == "train":
        logits = ctrl.tanh_c * jnp.tanh(logits)
    return logits, hxn, cxn


if __name__ == "__main__":
    key = jax.random.PRNGKey(0)

    B = 2            # batch
    H = 32           # controller_hid
    NUM_BLOCKS = 4
    ACTS = ["tanh", "ReLU", "identity", "sigmoid"]

    ctrl = ControllerPallas(
        key, num_blocks=NUM_BLOCKS, shared_rnn_activations=ACTS,
        controller_hid=H, softmax_temperature=5.0, tanh_c=2.5, mode="train")

    # --- per-step forward(): step 0, block_idx=0, is_embed=True --------------
    inputs0 = ctrl.static_input(B)
    hidden0 = ctrl.init_hidden(B)
    logits0, hidden1 = ctrl.forward(inputs0, hidden0, block_idx=0, is_embed=True)
    jax.block_until_ready(logits0)

    z = jnp.zeros((B, H), jnp.float32)
    ref_l0, ref_h0, ref_c0 = _reference_forward(ctrl, z, z, z, 0)
    assert jnp.allclose(logits0, ref_l0, atol=1e-5, rtol=1e-5)
    assert jnp.allclose(hidden1[0], ref_h0, atol=1e-5, rtol=1e-5)
    assert jnp.allclose(hidden1[1], ref_c0, atol=1e-5, rtol=1e-5)

    # --- per-step forward(): step 1, block_idx=2, token indices --------------
    tok = jax.random.randint(jax.random.PRNGKey(1), (B,), 0,
                             ctrl.num_total_tokens)
    logits1, hidden2 = ctrl.forward(tok, hidden1, block_idx=2, is_embed=False)
    jax.block_until_ready(logits1)

    embed1 = jnp.take(ctrl.encoder, tok, axis=0)
    ref_l1, ref_h1, ref_c1 = _reference_forward(ctrl, embed1,
                                                hidden1[0], hidden1[1], 2)
    assert jnp.allclose(logits1, ref_l1, atol=1e-5, rtol=1e-5)
    assert jnp.allclose(hidden2[0], ref_h1, atol=1e-5, rtol=1e-5)
    assert jnp.allclose(hidden2[1], ref_c1, atol=1e-5, rtol=1e-5)

    # --- fused rollout: all sample() forward steps in a single pallas_call ---
    num_steps = 2 * (NUM_BLOCKS - 1) + 1
    step_tokens = jax.random.randint(jax.random.PRNGKey(2), (num_steps - 1, B),
                                     0, ctrl.num_total_tokens)
    logits_all, (hx_f, cx_f) = ctrl.forward_rollout(step_tokens)
    jax.block_until_ready(logits_all)

    hx_r = jnp.zeros((B, H), jnp.float32)
    cx_r = jnp.zeros((B, H), jnp.float32)
    for s in range(num_steps):
        if s == 0:
            embed = jnp.zeros((B, H), jnp.float32)     # static zero input
        else:
            embed = jnp.take(ctrl.encoder, step_tokens[s - 1], axis=0)
        l_r, hx_r, cx_r = _reference_forward(ctrl, embed, hx_r, cx_r, s)
        V = ctrl.num_tokens[s]
        assert jnp.allclose(logits_all[s, :, :V], l_r, atol=2e-4, rtol=2e-4), s
    assert jnp.allclose(hx_f, hx_r, atol=2e-4, rtol=2e-4)
    assert jnp.allclose(cx_f, cx_r, atol=2e-4, rtol=2e-4)

    print("KERNEL_OK")
</pallas_src>

<mosaic_0001>
module attributes {stable_mosaic.version = 11 : i64} {
  func.func @_controller_step_kernel(%arg0: memref<2x128xf32, #tpu.memory_space<vmem>>, %arg1: memref<2x128xf32, #tpu.memory_space<vmem>>, %arg2: memref<2x128xf32, #tpu.memory_space<vmem>>, %arg3: memref<128x512xf32, #tpu.memory_space<vmem>>, %arg4: memref<128x512xf32, #tpu.memory_space<vmem>>, %arg5: memref<1x512xf32, #tpu.memory_space<vmem>>, %arg6: memref<128x128xf32, #tpu.memory_space<vmem>>, %arg7: memref<1x128xf32, #tpu.memory_space<vmem>>, %arg8: memref<2x128xf32, #tpu.memory_space<vmem>>, %arg9: memref<2x128xf32, #tpu.memory_space<vmem>>, %arg10: memref<2x128xf32, #tpu.memory_space<vmem>>) attributes {dimension_semantics = [], scalar_prefetch = 0 : i64, scratch_operands = 0 : i64, tpu.core_type = #tpu.core_type<tc>} {
    %c0 = arith.constant 0 : index
    %c0_0 = arith.constant 0 : index
    %0 = vector.load %arg0[%c0, %c0_0] : memref<2x128xf32, #tpu.memory_space<vmem>>, vector<2x128xf32>
    %c0_1 = arith.constant 0 : index
    %c0_2 = arith.constant 0 : index
    %1 = vector.load %arg1[%c0_1, %c0_2] : memref<2x128xf32, #tpu.memory_space<vmem>>, vector<2x128xf32>
    %c0_3 = arith.constant 0 : index
    %c0_4 = arith.constant 0 : index
    %2 = vector.load %arg2[%c0_3, %c0_4] : memref<2x128xf32, #tpu.memory_space<vmem>>, vector<2x128xf32>
    %c0_5 = arith.constant 0 : index
    %c0_6 = arith.constant 0 : index
    %3 = vector.load %arg3[%c0_5, %c0_6] : memref<128x512xf32, #tpu.memory_space<vmem>>, vector<128x512xf32>
    %cst = arith.constant dense<0.000000e+00> : vector<2x512xf32>
    %4 = tpu.matmul %0, %3, %cst {dimension_numbers = #tpu.dot_dimension_numbers<[1], [0], [0], [1], [0, 0, 1, 1], [], []>} : vector<2x128xf32>, vector<128x512xf32>, vector<2x512xf32> -> vector<2x512xf32>
    %c0_7 = arith.constant 0 : index
    %c0_8 = arith.constant 0 : index
    %5 = vector.load %arg4[%c0_7, %c0_8] : memref<128x512xf32, #tpu.memory_space<vmem>>, vector<128x512xf32>
    %cst_9 = arith.constant dense<0.000000e+00> : vector<2x512xf32>
    %6 = tpu.matmul %1, %5, %cst_9 {dimension_numbers = #tpu.dot_dimension_numbers<[1], [0], [0], [1], [0, 0, 1, 1], [], []>} : vector<2x128xf32>, vector<128x512xf32>, vector<2x512xf32> -> vector<2x512xf32>
    %7 = arith.addf %4, %6 : vector<2x512xf32>
    %c0_10 = arith.constant 0 : index
    %c0_11 = arith.constant 0 : index
    %8 = vector.load %arg5[%c0_10, %c0_11] : memref<1x512xf32, #tpu.memory_space<vmem>>, vector<1x512xf32>
    %9 = vector.broadcast %8 : vector<1x512xf32> to vector<2x512xf32>
    %10 = arith.addf %7, %9 : vector<2x512xf32>
    %11 = vector.extract_strided_slice %10 {offsets = [0, 0], sizes = [2, 128], strides = [1, 1]} : vector<2x512xf32> to vector<2x128xf32>
    %12 = arith.negf %11 : vector<2x128xf32>
    %13 = math.exp %12 : vector<2x128xf32>
    %cst_12 = arith.constant 1.000000e+00 : f32
    %14 = vector.broadcast %cst_12 : f32 to vector<2x128xf32>
    %15 = arith.addf %14, %13 : vector<2x128xf32>
    %16 = arith.divf %14, %15 : vector<2x128xf32>
    %17 = vector.extract_strided_slice %10 {offsets = [0, 128], sizes = [2, 128], strides = [1, 1]} : vector<2x512xf32> to vector<2x128xf32>
    %18 = arith.negf %17 : vector<2x128xf32>
    %19 = math.exp %18 : vector<2x128xf32>
    %cst_13 = arith.constant 1.000000e+00 : f32
    %20 = vector.broadcast %cst_13 : f32 to vector<2x128xf32>
    %21 = arith.addf %20, %19 : vector<2x128xf32>
    %22 = arith.divf %20, %21 : vector<2x128xf32>
    %23 = vector.extract_strided_slice %10 {offsets = [0, 256], sizes = [2, 128], strides = [1, 1]} : vector<2x512xf32> to vector<2x128xf32>
    %24 = math.tanh %23 : vector<2x128xf32>
    %25 = vector.extract_strided_slice %10 {offsets = [0, 384], sizes = [2, 128], strides = [1, 1]} : vector<2x512xf32> to vector<2x128xf32>
    %26 = arith.negf %25 : vector<2x128xf32>
    %27 = math.exp %26 : vector<2x128xf32>
    %cst_14 = arith.constant 1.000000e+00 : f32
    %28 = vector.broadcast %cst_14 : f32 to vector<2x128xf32>
    %29 = arith.addf %28, %27 : vector<2x128xf32>
    %30 = arith.divf %28, %29 : vector<2x128xf32>
    %31 = arith.mulf %22, %2 : vector<2x128xf32>
    %32 = arith.mulf %16, %24 : vector<2x128xf32>
    %33 = arith.addf %31, %32 : vector<2x128xf32>
    %34 = math.tanh %33 : vector<2x128xf32>
    %35 = arith.mulf %30, %34 : vector<2x128xf32>
    %c0_15 = arith.constant 0 : index
    %c0_16 = arith.constant 0 : index
    %36 = vector.load %arg6[%c0_15, %c0_16] : memref<128x128xf32, #tpu.memory_space<vmem>>, vector<128x128xf32>
    %cst_17 = arith.constant dense<0.000000e+00> : vector<2x128xf32>
    %37 = tpu.matmul %35, %36, %cst_17 {dimension_numbers = #tpu.dot_dimension_numbers<[1], [0], [0], [1], [0, 0, 1, 1], [], []>} : vector<2x128xf32>, vector<128x128xf32>, vector<2x128xf32> -> vector<2x128xf32>
    %c0_18 = arith.constant 0 : index
    %c0_19 = arith.constant 0 : index
    %38 = vector.load %arg7[%c0_18, %c0_19] : memref<1x128xf32, #tpu.memory_space<vmem>>, vector<1x128xf32>
    %39 = vector.broadcast %38 : vector<1x128xf32> to vector<2x128xf32>
    %40 = arith.addf %37, %39 : vector<2x128xf32>
    %41 = math.tanh %40 : vector<2x128xf32>
    %cst_20 = arith.constant 2.500000e+00 : f32
    %42 = vector.broadcast %cst_20 : f32 to vector<2x128xf32>
    %43 = arith.mulf %42, %41 : vector<2x128xf32>
    %c0_21 = arith.constant 0 : index
    %c0_22 = arith.constant 0 : index
    %44 = vector.load %arg8[%c0_21, %c0_22] : memref<2x128xf32, #tpu.memory_space<vmem>>, vector<2x128xf32>
    tpu.vector_store %arg8[%c0_21, %c0_22], %43 {strides = array<i32>} : memref<2x128xf32, #tpu.memory_space<vmem>>, vector<2x128xf32>,
    %c0_23 = arith.constant 0 : index
    %c0_24 = arith.constant 0 : index
    %45 = vector.load %arg9[%c0_23, %c0_24] : memref<2x128xf32, #tpu.memory_space<vmem>>, vector<2x128xf32>
    tpu.vector_store %arg9[%c0_23, %c0_24], %35 {strides = array<i32>} : memref<2x128xf32, #tpu.memory_space<vmem>>, vector<2x128xf32>,
    %c0_25 = arith.constant 0 : index
    %c0_26 = arith.constant 0 : index
    %46 = vector.load %arg10[%c0_25, %c0_26] : memref<2x128xf32, #tpu.memory_space<vmem>>, vector<2x128xf32>
    tpu.vector_store %arg10[%c0_25, %c0_26], %33 {strides = array<i32>} : memref<2x128xf32, #tpu.memory_space<vmem>>, vector<2x128xf32>,
    return
  }
}

</mosaic_0001>

<llo_original>
// kernel: controller_step_pallas.1
$region0: #{controller_step_pallas.1}
  #allocation0 [shape = 'u32[]', space=smem, size = 0x4, offset = 0x4, fixed_abs, tag = 'smem constant byte address 0x4 - core index']
  #allocation1 [shape = 'u32[144,128]{1,0:T(1,128)}', space=vmem, size = 0x12000, scoped, tag = 'internal scratch']
  %s0 = inlined_call_operand.hbm [shape: f32[2,128], index: 0, kind: input, shape index: {}]
  %s1 = inlined_call_operand.vmem [shape: f32[2,128], index: 1, kind: input, shape index: {}, may-alias: {1,9}]
  %s2 = inlined_call_operand.vmem [shape: f32[2,128], index: 2, kind: input, shape index: {}, may-alias: {2,10}]
  %s3 = inlined_call_operand.hbm [shape: f32[128,512], index: 3, kind: input, shape index: {}]
  %s4 = inlined_call_operand.hbm [shape: f32[128,512], index: 4, kind: input, shape index: {}]
  %s5 = inlined_call_operand.vmem [shape: f32[1,512], index: 5, kind: input, shape index: {}]
  %s6 = inlined_call_operand.hbm [shape: f32[128,128], index: 6, kind: input, shape index: {}]
  %s7 = inlined_call_operand.vmem [shape: f32[1,128], index: 7, kind: input, shape index: {}]
  %s8 = inlined_call_operand.vmem [shape: f32[2,128], index: 8, kind: output, shape index: {0}]
  %s9 = inlined_call_operand.vmem [shape: f32[2,128], index: 9, kind: output, shape index: {1}, may-alias: {1,9}]
  %s10 = inlined_call_operand.vmem [shape: f32[2,128], index: 10, kind: output, shape index: {2}, may-alias: {2,10}]
  %11 = xla_tuple %s8, %s9, %s10
  %s12 = sld [smem:[#allocation0]]
  $region74: #{controller_step_pallas.1} parent=0
    _
  %s14 = ssub.s32 1, %s12
  %s15 = scalar_select 0, %s14, %s12
  $region1: #{controller_step_pallas.1} parent=0
    #allocation2 [shape = 'u8[1024]{0}', space=vmem, size = 0x400, scoped, tag = 'input window, operand 0, single buffered']
    #allocation3 [shape = 's32[1]{0}', space=sflag, size = 0x4, scoped, tag = 'scoped memory for controller_step_pallas.1']
    #allocation4 [shape = 'u8[262144]{0}', space=vmem, size = 0x40000, scoped, tag = 'input window, operand 3, single buffered']
    #allocation5 [shape = 's32[1]{0}', space=sflag, size = 0x4, scoped, tag = 'scoped memory for controller_step_pallas.1']
    #allocation6 [shape = 'u8[262144]{0}', space=vmem, size = 0x40000, scoped, tag = 'input window, operand 4, single buffered']
    #allocation7 [shape = 'u8[65536]{0}', space=vmem, size = 0x10000, scoped, tag = 'input window, operand 6, single buffered']
    #allocation8 [shape = 's32[1]{0}', space=sflag, size = 0x4, scoped, tag = 'scoped memory for controller_step_pallas.1']
    %16 = vsyncpa [#allocation3], 0
    %17 = vsyncpa [#allocation5], 0
    %18 = vsyncpa [#allocation8], 0
    // Predicated region
    $region2: #{controller_step_pallas.1} parent=1 // pred_check
      _
    $region3: #{controller_step_pallas.1} parent=1 // pred_check_branch
      %20 = sbr.rel (0) target = $region5
    $region4: #{controller_step_pallas.1} parent=1 // pred_region
      %s22 = ssub.s32 32, 32
      %23 = vsyncadd [#allocation3], %s22
      %s25 = sshll.u32 [#allocation2], 4
      %s26 = int_to_ptr.vmem [resolvable:$true] %s25
      %28 = dma.hbm_to_vmem [thread:$0]  %s0, 32, %s26, [#allocation3]
    $region5: #{controller_step_pallas.1} parent=1 // pred_fallthru
      _
    // Predicated region
    $region6: #{controller_step_pallas.1} parent=1 // pred_check
      _
    $region7: #{controller_step_pallas.1} parent=1 // pred_check_branch
      %30 = sbr.rel (0) target = $region9
    $region8: #{controller_step_pallas.1} parent=1 // pred_region
      _
    $region9: #{controller_step_pallas.1} parent=1 // pred_fallthru
      _
    // Predicated region
    $region10: #{controller_step_pallas.1} parent=1 // pred_check
      _
    $region11: #{controller_step_pallas.1} parent=1 // pred_check_branch
      %32 = sbr.rel (0) target = $region13
    $region12: #{controller_step_pallas.1} parent=1 // pred_region
      _
    $region13: #{controller_step_pallas.1} parent=1 // pred_fallthru
      _
    // Predicated region
    $region14: #{controller_step_pallas.1} parent=1 // pred_check
      _
    $region15: #{controller_step_pallas.1} parent=1 // pred_check_branch
      %34 = sbr.rel (0) target = $region17
    $region16: #{controller_step_pallas.1} parent=1 // pred_region
      %s36 = ssub.s32 8192, 8192
      %37 = vsyncadd [#allocation5], %s36
      %s38 = sshll.u32 [#allocation4], 4
      %s39 = int_to_ptr.vmem [resolvable:$true] %s38
      %44 = dma.hbm_to_vmem [thread:$0]  %s3, 8192, %s39, [#allocation5], 512, 512, 32
    $region17: #{controller_step_pallas.1} parent=1 // pred_fallthru
      _
    // Predicated region
    $region18: #{controller_step_pallas.1} parent=1 // pred_check
      _
    $region19: #{controller_step_pallas.1} parent=1 // pred_check_branch
      %46 = sbr.rel (0) target = $region21
    $region20: #{controller_step_pallas.1} parent=1 // pred_region
      %s48 = ssub.s32 8192, 8192
      %49 = vsyncadd [#allocation5], %s48
      %s50 = sshll.u32 [#allocation6], 4
      %s51 = int_to_ptr.vmem [resolvable:$true] %s50
      %56 = dma.hbm_to_vmem [thread:$0]  %s4, 8192, %s51, [#allocation5], 512, 512, 32
    $region21: #{controller_step_pallas.1} parent=1 // pred_fallthru
      _
    // Predicated region
    $region22: #{controller_step_pallas.1} parent=1 // pred_check
      _
    $region23: #{controller_step_pallas.1} parent=1 // pred_check_branch
      %58 = sbr.rel (0) target = $region25
    $region24: #{controller_step_pallas.1} parent=1 // pred_region
      _
    $region25: #{controller_step_pallas.1} parent=1 // pred_fallthru
      _
    // Predicated region
    $region26: #{controller_step_pallas.1} parent=1 // pred_check
      _
    $region27: #{controller_step_pallas.1} parent=1 // pred_check_branch
      %60 = sbr.rel (0) target = $region29
    $region28: #{controller_step_pallas.1} parent=1 // pred_region
      %s62 = ssub.s32 2048, 2048
      %63 = vsyncadd [#allocation8], %s62
      %s64 = sshll.u32 [#allocation7], 4
      %s65 = int_to_ptr.vmem [resolvable:$true] %s64
      %70 = dma.hbm_to_vmem [thread:$0]  %s6, 2048, %s65, [#allocation8], 128, 128, 8
    $region29: #{controller_step_pallas.1} parent=1 // pred_fallthru
      _
    // Predicated region
    $region30: #{controller_step_pallas.1} parent=1 // pred_check
      _
    $region31: #{controller_step_pallas.1} parent=1 // pred_check_branch
      %72 = sbr.rel (0) target = $region33
    $region32: #{controller_step_pallas.1} parent=1 // pred_region
      _
    $region33: #{controller_step_pallas.1} parent=1 // pred_fallthru
      _
    // Predicated region
    $region34: #{controller_step_pallas.1} parent=1 // pred_check
      _
    $region35: #{controller_step_pallas.1} parent=1 // pred_check_branch
      %74 = sbr.rel (0) target = $region37
    $region36: #{controller_step_pallas.1} parent=1 // pred_region
      %75 = dma.done [#allocation3], 32
    $region37: #{controller_step_pallas.1} parent=1 // pred_fallthru
      _
    // Predicated region
    $region38: #{controller_step_pallas.1} parent=1 // pred_check
      _
    $region39: #{controller_step_pallas.1} parent=1 // pred_check_branch
      %77 = sbr.rel (0) target = $region41
    $region40: #{controller_step_pallas.1} parent=1 // pred_region
      %78 = dma.done [#allocation5], 8192
    $region41: #{controller_step_pallas.1} parent=1 // pred_fallthru
      _
    // Predicated region
    $region42: #{controller_step_pallas.1} parent=1 // pred_check
      _
    $region43: #{controller_step_pallas.1} parent=1 // pred_check_branch
      %80 = sbr.rel (0) target = $region45
    $region44: #{controller_step_pallas.1} parent=1 // pred_region
      %81 = dma.done [#allocation5], 8192
    $region45: #{controller_step_pallas.1} parent=1 // pred_fallthru
      _
    // Predicated region
    $region46: #{controller_step_pallas.1} parent=1 // pred_check
      _
    $region47: #{controller_step_pallas.1} parent=1 // pred_check_branch
      %83 = sbr.rel (0) target = $region49
    $region48: #{controller_step_pallas.1} parent=1 // pred_region
      %84 = dma.done [#allocation8], 2048
    $region49: #{controller_step_pallas.1} parent=1 // pred_fallthru
      _
    %v85 = vld [vmem:[#allocation2] sm:$0x3]
    %v86 = vld [vmem:[%s1] sm:$0x3]
    %v87 = vld [vmem:[%s2] sm:$0x3]
    %v88 = vld [vmem:[#allocation4] sm:$0xff]
    %v89 = vld [vmem:[#allocation4 + $0x8] sm:$0xff]
    %v90 = vld [vmem:[#allocation4 + $0x10] sm:$0xff]
    %v91 = vld [vmem:[#allocation4 + $0x18] sm:$0xff]
    %v92 = vld [vmem:[#allocation4 + $0x20] sm:$0xff]
    %v93 = vld [vmem:[#allocation4 + $0x28] sm:$0xff]
    %v94 = vld [vmem:[#allocation4 + $0x30] sm:$0xff]
    %v95 = vld [vmem:[#allocation4 + $0x38] sm:$0xff]
    %v96 = vld [vmem:[#allocation4 + $0x40] sm:$0xff]
    %v97 = vld [vmem:[#allocation4 + $0x48] sm:$0xff]
    %v98 = vld [vmem:[#allocation4 + $0x50] sm:$0xff]
    %v99 = vld [vmem:[#allocation4 + $0x58] sm:$0xff]
    %v100 = vld [vmem:[#allocation4 + $0x60] sm:$0xff]
    %v101 = vld [vmem:[#allocation4 + $0x68] sm:$0xff]
    %v102 = vld [vmem:[#allocation4 + $0x70] sm:$0xff]
    %v103 = vld [vmem:[#allocation4 + $0x78] sm:$0xff]
    %v104 = vld [vmem:[#allocation4 + $0x80] sm:$0xff]
    %v105 = vld [vmem:[#allocation4 + $0x88] sm:$0xff]
    %v106 = vld [vmem:[#allocation4 + $0x90] sm:$0xff]
    %v107 = vld [vmem:[#allocation4 + $0x98] sm:$0xff]
    %v108 = vld [vmem:[#allocation4 + $0xa0] sm:$0xff]
    %v109 = vld [vmem:[#allocation4 + $0xa8] sm:$0xff]
    %v110 = vld [vmem:[#allocation4 + $0xb0] sm:$0xff]
    %v111 = vld [vmem:[#allocation4 + $0xb8] sm:$0xff]
    %v112 = vld [vmem:[#allocation4 + $0xc0] sm:$0xff]
    %v113 = vld [vmem:[#allocation4 + $0xc8] sm:$0xff]
    %v114 = vld [vmem:[#allocation4 + $0xd0] sm:$0xff]
    %v115 = vld [vmem:[#allocation4 + $0xd8] sm:$0xff]
    %v116 = vld [vmem:[#allocation4 + $0xe0] sm:$0xff]
    %v117 = vld [vmem:[#allocation4 + $0xe8] sm:$0xff]
    %v118 = vld [vmem:[#allocation4 + $0xf0] sm:$0xff]
    %v119 = vld [vmem:[#allocation4 + $0xf8] sm:$0xff]
    %v120 = vld [vmem:[#allocation4 + $0x100] sm:$0xff]
    %v121 = vld [vmem:[#allocation4 + $0x108] sm:$0xff]
    %v122 = vld [vmem:[#allocation4 + $0x110] sm:$0xff]
    %v123 = vld [vmem:[#allocation4 + $0x118] sm:$0xff]
    %v124 = vld [vmem:[#allocation4 + $0x120] sm:$0xff]
    %v125 = vld [vmem:[#allocation4 + $0x128] sm:$0xff]
    %v126 = vld [vmem:[#allocation4 + $0x130] sm:$0xff]
    %v127 = vld [vmem:[#allocation4 + $0x138] sm:$0xff]
    %v128 = vld [vmem:[#allocation4 + $0x140] sm:$0xff]
    %v129 = vld [vmem:[#allocation4 + $0x148] sm:$0xff]
    %v130 = vld [vmem:[#allocation4 + $0x150] sm:$0xff]
    %v131 = vld [vmem:[#allocation4 + $0x158] sm:$0xff]
    %v132 = vld [vmem:[#allocation4 + $0x160] sm:$0xff]
    %v133 = vld [vmem:[#allocation4 + $0x168] sm:$0xff]
    %v134 = vld [vmem:[#allocation4 + $0x170] sm:$0xff]
    %v135 = vld [vmem:[#allocation4 + $0x178] sm:$0xff]
    %v136 = vld [vmem:[#allocation4 + $0x180] sm:$0xff]
    %v137 = vld [vmem:[#allocation4 + $0x188] sm:$0xff]
    %v138 = vld [vmem:[#allocation4 + $0x190] sm:$0xff]
    %v139 = vld [vmem:[#allocation4 + $0x198] sm:$0xff]
    %v140 = vld [vmem:[#allocation4 + $0x1a0] sm:$0xff]
    %v141 = vld [vmem:[#allocation4 + $0x1a8] sm:$0xff]
    %v142 = vld [vmem:[#allocation4 + $0x1b0] sm:$0xff]
    %v143 = vld [vmem:[#allocation4 + $0x1b8] sm:$0xff]
    %v144 = vld [vmem:[#allocation4 + $0x1c0] sm:$0xff]
    %v145 = vld [vmem:[#allocation4 + $0x1c8] sm:$0xff]
    %v146 = vld [vmem:[#allocation4 + $0x1d0] sm:$0xff]
    %v147 = vld [vmem:[#allocation4 + $0x1d8] sm:$0xff]
    %v148 = vld [vmem:[#allocation4 + $0x1e0] sm:$0xff]
    %v149 = vld [vmem:[#allocation4 + $0x1e8] sm:$0xff]
    %v150 = vld [vmem:[#allocation4 + $0x1f0] sm:$0xff]
    %v151 = vld [vmem:[#allocation4 + $0x1f8] sm:$0xff]
    %v152 = vld [vmem:[#allocation6] sm:$0xff]
    %v153 = vld [vmem:[#allocation6 + $0x8] sm:$0xff]
    %v154 = vld [vmem:[#allocation6 + $0x10] sm:$0xff]
    %v155 = vld [vmem:[#allocation6 + $0x18] sm:$0xff]
    %v156 = vld [vmem:[#allocation6 + $0x20] sm:$0xff]
    %v157 = vld [vmem:[#allocation6 + $0x28] sm:$0xff]
    %v158 = vld [vmem:[#allocation6 + $0x30] sm:$0xff]
    %v159 = vld [vmem:[#allocation6 + $0x38] sm:$0xff]
    %v160 = vld [vmem:[#allocation6 + $0x40] sm:$0xff]
    %v161 = vld [vmem:[#allocation6 + $0x48] sm:$0xff]
    %v162 = vld [vmem:[#allocation6 + $0x50] sm:$0xff]
    %v163 = vld [vmem:[#allocation6 + $0x58] sm:$0xff]
    %v164 = vld [vmem:[#allocation6 + $0x60] sm:$0xff]
    %v165 = vld [vmem:[#allocation6 + $0x68] sm:$0xff]
    %v166 = vld [vmem:[#allocation6 + $0x70] sm:$0xff]
    %v167 = vld [vmem:[#allocation6 + $0x78] sm:$0xff]
    %v168 = vld [vmem:[#allocation6 + $0x80] sm:$0xff]
    %v169 = vld [vmem:[#allocation6 + $0x88] sm:$0xff]
    %v170 = vld [vmem:[#allocation6 + $0x90] sm:$0xff]
    %v171 = vld [vmem:[#allocation6 + $0x98] sm:$0xff]
    %v172 = vld [vmem:[#allocation6 + $0xa0] sm:$0xff]
    %v173 = vld [vmem:[#allocation6 + $0xa8] sm:$0xff]
    %v174 = vld [vmem:[#allocation6 + $0xb0] sm:$0xff]
    %v175 = vld [vmem:[#allocation6 + $0xb8] sm:$0xff]
    %v176 = vld [vmem:[#allocation6 + $0xc0] sm:$0xff]
    %v177 = vld [vmem:[#allocation6 + $0xc8] sm:$0xff]
    %v178 = vld [vmem:[#allocation6 + $0xd0] sm:$0xff]
    %v179 = vld [vmem:[#allocation6 + $0xd8] sm:$0xff]
    %v180 = vld [vmem:[#allocation6 + $0xe0] sm:$0xff]
    %v181 = vld [vmem:[#allocation6 + $0xe8] sm:$0xff]
    %v182 = vld [vmem:[#allocation6 + $0xf0] sm:$0xff]
    %v183 = vld [vmem:[#allocation6 + $0xf8] sm:$0xff]
    %v184 = vld [vmem:[#allocation6 + $0x100] sm:$0xff]
    %v185 = vld [vmem:[#allocation6 + $0x108] sm:$0xff]
    %v186 = vld [vmem:[#allocation6 + $0x110] sm:$0xff]
    %v187 = vld [vmem:[#allocation6 + $0x118] sm:$0xff]
    %v188 = vld [vmem:[#allocation6 + $0x120] sm:$0xff]
    %v189 = vld [vmem:[#allocation6 + $0x128] sm:$0xff]
    %v190 = vld [vmem:[#allocation6 + $0x130] sm:$0xff]
    %v191 = vld [vmem:[#allocation6 + $0x138] sm:$0xff]
    %v192 = vld [vmem:[#allocation6 + $0x140] sm:$0xff]
    %v193 = vld [vmem:[#allocation6 + $0x148] sm:$0xff]
    %v194 = vld [vmem:[#allocation6 + $0x150] sm:$0xff]
    %v195 = vld [vmem:[#allocation6 + $0x158] sm:$0xff]
    %v196 = vld [vmem:[#allocation6 + $0x160] sm:$0xff]
    %v197 = vld [vmem:[#allocation6 + $0x168] sm:$0xff]
    %v198 = vld [vmem:[#allocation6 + $0x170] sm:$0xff]
    %v199 = vld [vmem:[#allocation6 + $0x178] sm:$0xff]
    %v200 = vld [vmem:[#allocation6 + $0x180] sm:$0xff]
    %v201 = vld [vmem:[#allocation6 + $0x188] sm:$0xff]
    %v202 = vld [vmem:[#allocation6 + $0x190] sm:$0xff]
    %v203 = vld [vmem:[#allocation6 + $0x198] sm:$0xff]
    %v204 = vld [vmem:[#allocation6 + $0x1a0] sm:$0xff]
    %v205 = vld [vmem:[#allocation6 + $0x1a8] sm:$0xff]
    %v206 = vld [vmem:[#allocation6 + $0x1b0] sm:$0xff]
    %v207 = vld [vmem:[#allocation6 + $0x1b8] sm:$0xff]
    %v208 = vld [vmem:[#allocation6 + $0x1c0] sm:$0xff]
    %v209 = vld [vmem:[#allocation6 + $0x1c8] sm:$0xff]
    %v210 = vld [vmem:[#allocation6 + $0x1d0] sm:$0xff]
    %v211 = vld [vmem:[#allocation6 + $0x1d8] sm:$0xff]
    %v212 = vld [vmem:[#allocation6 + $0x1e0] sm:$0xff]
    %v213 = vld [vmem:[#allocation6 + $0x1e8] sm:$0xff]
    %v214 = vld [vmem:[#allocation6 + $0x1f0] sm:$0xff]
    %v215 = vld [vmem:[#allocation6 + $0x1f8] sm:$0xff]
    %216 = vmatprep.subr.mxu0 %v153
    %217 = vmatpush1.msra.mxu0 %v152
    %218 = vmatprep.subr.mxu0 %v157
    %219 = vmatpush1.msra.mxu0 %v156
    %220 = vmatprep.subr.mxu0 %v161
    %221 = vmatpush1.msra.mxu0 %v160
    %222 = vmatprep.subr.mxu0 %v165
    %223 = vmatpush1.msra.mxu0 %v164
    %224 = vmatprep.subr.mxu0 %v169
    %225 = vmatpush1.msra.mxu0 %v168
    %226 = vmatprep.subr.mxu0 %v173
    %227 = vmatpush1.msra.mxu0 %v172
    %228 = vmatprep.subr.mxu0 %v177
    %229 = vmatpush1.msra.mxu0 %v176
    %230 = vmatprep.subr.mxu0 %v181
    %231 = vmatpush1.msra.mxu0 %v180
    %232 = vmatprep.subr.mxu0 %v185
    %233 = vmatpush1.msra.mxu0 %v184
    %234 = vmatprep.subr.mxu0 %v189
    %235 = vmatpush1.msra.mxu0 %v188
    %236 = vmatprep.subr.mxu0 %v193
    %237 = vmatpush1.msra.mxu0 %v192
    %238 = vmatprep.subr.mxu0 %v197
    %239 = vmatpush1.msra.mxu0 %v196
    %240 = vmatprep.subr.mxu0 %v201
    %241 = vmatpush1.msra.mxu0 %v200
    %242 = vmatprep.subr.mxu0 %v205
    %243 = vmatpush1.msra.mxu0 %v204
    %244 = vmatprep.subr.mxu0 %v209
    %245 = vmatpush1.msra.mxu0 %v208
    %246 = vmatprep.subr.mxu0 %v213
    %247 = vmatpush1.msra.mxu0 %v212
    %248 = vmatprep.subr.mxu0 0.0
    %249 = vmatpush1.msra.mxu0 0.0
    %250 = vmatprep.subr.mxu0 0.0
    %251 = vmatpush1.msra.mxu0 0.0
    %252 = vmatprep.subr.mxu0 0.0
    %253 = vmatpush1.msra.mxu0 0.0
    %254 = vmatprep.subr.mxu0 0.0
    %255 = vmatpush1.msra.mxu0 0.0
    %256 = vmatprep.subr.mxu0 0.0
    %257 = vmatpush1.msra.mxu0 0.0
    %258 = vmatprep.subr.mxu0 0.0
    %259 = vmatpush1.msra.mxu0 0.0
    %260 = vmatprep.subr.mxu0 0.0
    %261 = vmatpush1.msra.mxu0 0.0
    %262 = vmatprep.subr.mxu0 0.0
    %263 = vmatpush1.msra.mxu0 0.0
    %264 = vmatprep.subr.mxu0 0.0
    %265 = vmatpush1.msra.mxu0 0.0
    %266 = vmatprep.subr.mxu0 0.0
    %267 = vmatpush1.msra.mxu0 0.0
    %268 = vmatprep.subr.mxu0 0.0
    %269 = vmatpush1.msra.mxu0 0.0
    %270 = vmatprep.subr.mxu0 0.0
    %271 = vmatpush1.msra.mxu0 0.0
    %272 = vmatprep.subr.mxu0 0.0
    %273 = vmatpush1.msra.mxu0 0.0
    %274 = vmatprep.subr.mxu0 0.0
    %275 = vmatpush1.msra.mxu0 0.0
    %276 = vmatprep.subr.mxu0 0.0
    %277 = vmatpush1.msra.mxu0 0.0
    %278 = vmatprep.subr.mxu0 0.0
    %279 = vmatpush1.msra.mxu0 0.0
    %280 = vmatprep.mubr.f32.mxu0 0.0
    %281 = vmatmul.mubr.f32.gmra.mrb[0].mxu0 %v86
    %v282 = vpop.f32.mrb[0].mxu0
    %v283 = vadd.f32 0.0, %v282
    %v284 = vpop.f32.mrb[0].mxu0
    %v285 = vadd.f32 0.0, %v284
    %286 = vdwg.mxu0
    %287 = vmatprep.subr.mxu0 %v155
    %288 = vmatpush1.msra.mxu0 %v154
    %289 = vmatprep.subr.mxu0 %v159
    %290 = vmatpush1.msra.mxu0 %v158
    %291 = vmatprep.subr.mxu0 %v163
    %292 = vmatpush1.msra.mxu0 %v162
    %293 = vmatprep.subr.mxu0 %v167
    %294 = vmatpush1.msra.mxu0 %v166
    %295 = vmatprep.subr.mxu0 %v171
    %296 = vmatpush1.msra.mxu0 %v170
    %297 = vmatprep.subr.mxu0 %v175
    %298 = vmatpush1.msra.mxu0 %v174
    %299 = vmatprep.subr.mxu0 %v179
    %300 = vmatpush1.msra.mxu0 %v178
    %301 = vmatprep.subr.mxu0 %v183
    %302 = vmatpush1.msra.mxu0 %v182
    %303 = vmatprep.subr.mxu0 %v187
    %304 = vmatpush1.msra.mxu0 %v186
    %305 = vmatprep.subr.mxu0 %v191
    %306 = vmatpush1.msra.mxu0 %v190
    %307 = vmatprep.subr.mxu0 %v195
    %308 = vmatpush1.msra.mxu0 %v194
    %309 = vmatprep.subr.mxu0 %v199
    %310 = vmatpush1.msra.mxu0 %v198
    %311 = vmatprep.subr.mxu0 %v203
    %312 = vmatpush1.msra.mxu0 %v202
    %313 = vmatprep.subr.mxu0 %v207
    %314 = vmatpush1.msra.mxu0 %v206
    %315 = vmatprep.subr.mxu0 %v211
    %316 = vmatpush1.msra.mxu0 %v210
    %317 = vmatprep.subr.mxu0 %v215
    %318 = vmatpush1.msra.mxu0 %v214
    %319 = vmatprep.subr.mxu0 0.0
    %320 = vmatpush1.msra.mxu0 0.0
    %321 = vmatprep.subr.mxu0 0.0
    %322 = vmatpush1.msra.mxu0 0.0
    %323 = vmatprep.subr.mxu0 0.0
    %324 = vmatpush1.msra.mxu0 0.0
    %325 = vmatprep.subr.mxu0 0.0
    %326 = vmatpush1.msra.mxu0 0.0
    %327 = vmatprep.subr.mxu0 0.0
    %328 = vmatpush1.msra.mxu0 0.0
    %329 = vmatprep.subr.mxu0 0.0
    %330 = vmatpush1.msra.mxu0 0.0
    %331 = vmatprep.subr.mxu0 0.0
    %332 = vmatpush1.msra.mxu0 0.0
    %333 = vmatprep.subr.mxu0 0.0
    %334 = vmatpush1.msra.mxu0 0.0
    %335 = vmatprep.subr.mxu0 0.0
    %336 = vmatpush1.msra.mxu0 0.0
    %337 = vmatprep.subr.mxu0 0.0
    %338 = vmatpush1.msra.mxu0 0.0
    %339 = vmatprep.subr.mxu0 0.0
    %340 = vmatpush1.msra.mxu0 0.0
    %341 = vmatprep.subr.mxu0 0.0
    %342 = vmatpush1.msra.mxu0 0.0
    %343 = vmatprep.subr.mxu0 0.0
    %344 = vmatpush1.msra.mxu0 0.0
    %345 = vmatprep.subr.mxu0 0.0
    %346 = vmatpush1.msra.mxu0 0.0
    %347 = vmatprep.subr.mxu0 0.0
    %348 = vmatpush1.msra.mxu0 0.0
    %349 = vmatprep.subr.mxu0 0.0
    %350 = vmatpush1.msra.mxu0 0.0
    %351 = vmatprep.mubr.f32.mxu0 0.0
    %352 = vmatmul.mubr.f32.gmra.mrb[0].mxu0 %v86
    %v353 = vpop.f32.mrb[0].mxu0
    %v354 = vadd.f32 0.0, %v353
    %v355 = vpop.f32.mrb[0].mxu0
    %v356 = vadd.f32 0.0, %v355
    %357 = vdwg.mxu0
    %358 = vmatprep.subr.mxu0 %v89
    %359 = vmatpush1.msra.mxu0 %v88
    %360 = vmatprep.subr.mxu0 %v93
    %361 = vmatpush1.msra.mxu0 %v92
    %362 = vmatprep.subr.mxu0 %v97
    %363 = vmatpush1.msra.mxu0 %v96
    %364 = vmatprep.subr.mxu0 %v101
    %365 = vmatpush1.msra.mxu0 %v100
    %366 = vmatprep.subr.mxu0 %v105
    %367 = vmatpush1.msra.mxu0 %v104
    %368 = vmatprep.subr.mxu0 %v109
    %369 = vmatpush1.msra.mxu0 %v108
    %370 = vmatprep.subr.mxu0 %v113
    %371 = vmatpush1.msra.mxu0 %v112
    %372 = vmatprep.subr.mxu0 %v117
    %373 = vmatpush1.msra.mxu0 %v116
    %374 = vmatprep.subr.mxu0 %v121
    %375 = vmatpush1.msra.mxu0 %v120
    %376 = vmatprep.subr.mxu0 %v125
    %377 = vmatpush1.msra.mxu0 %v124
    %378 = vmatprep.subr.mxu0 %v129
    %379 = vmatpush1.msra.mxu0 %v128
    %380 = vmatprep.subr.mxu0 %v133
    %381 = vmatpush1.msra.mxu0 %v132
    %382 = vmatprep.subr.mxu0 %v137
    %383 = vmatpush1.msra.mxu0 %v136
    %384 = vmatprep.subr.mxu0 %v141
    %385 = vmatpush1.msra.mxu0 %v140
    %386 = vmatprep.subr.mxu0 %v145
    %387 = vmatpush1.msra.mxu0 %v144
    %388 = vmatprep.subr.mxu0 %v149
    %389 = vmatpush1.msra.mxu0 %v148
    %390 = vmatprep.subr.mxu0 0.0
    %391 = vmatpush1.msra.mxu0 0.0
    %392 = vmatprep.subr.mxu0 0.0
    %393 = vmatpush1.msra.mxu0 0.0
    %394 = vmatprep.subr.mxu0 0.0
    %395 = vmatpush1.msra.mxu0 0.0
    %396 = vmatprep.subr.mxu0 0.0
    %397 = vmatpush1.msra.mxu0 0.0
    %398 = vmatprep.subr.mxu0 0.0
    %399 = vmatpush1.msra.mxu0 0.0
    %400 = vmatprep.subr.mxu0 0.0
    %401 = vmatpush1.msra.mxu0 0.0
    %402 = vmatprep.subr.mxu0 0.0
    %403 = vmatpush1.msra.mxu0 0.0
    %404 = vmatprep.subr.mxu0 0.0
    %405 = vmatpush1.msra.mxu0 0.0
    %406 = vmatprep.subr.mxu0 0.0
    %407 = vmatpush1.msra.mxu0 0.0
    %408 = vmatprep.subr.mxu0 0.0
    %409 = vmatpush1.msra.mxu0 0.0
    %410 = vmatprep.subr.mxu0 0.0
    %411 = vmatpush1.msra.mxu0 0.0
    %412 = vmatprep.subr.mxu0 0.0
    %413 = vmatpush1.msra.mxu0 0.0
    %414 = vmatprep.subr.mxu0 0.0
    %415 = vmatpush1.msra.mxu0 0.0
    %416 = vmatprep.subr.mxu0 0.0
    %417 = vmatpush1.msra.mxu0 0.0
    %418 = vmatprep.subr.mxu0 0.0
    %419 = vmatpush1.msra.mxu0 0.0
    %420 = vmatprep.subr.mxu0 0.0
    %421 = vmatpush1.msra.mxu0 0.0
    %422 = vmatprep.mubr.f32.mxu0 0.0
    %423 = vmatmul.mubr.f32.gmra.mrb[0].mxu0 %v85
    %v424 = vpop.f32.mrb[0].mxu0
    %v425 = vadd.f32 %v283, %v424
    %v426 = vpop.f32.mrb[0].mxu0
    %v427 = vadd.f32 %v285, %v426
    %428 = vdwg.mxu0
    %429 = vmatprep.subr.mxu0 %v91
    %430 = vmatpush1.msra.mxu0 %v90
    %431 = vmatprep.subr.mxu0 %v95
    %432 = vmatpush1.msra.mxu0 %v94
    %433 = vmatprep.subr.mxu0 %v99
    %434 = vmatpush1.msra.mxu0 %v98
    %435 = vmatprep.subr.mxu0 %v103
    %436 = vmatpush1.msra.mxu0 %v102
    %437 = vmatprep.subr.mxu0 %v107
    %438 = vmatpush1.msra.mxu0 %v106
    %439 = vmatprep.subr.mxu0 %v111
    %440 = vmatpush1.msra.mxu0 %v110
    %441 = vmatprep.subr.mxu0 %v115
    %442 = vmatpush1.msra.mxu0 %v114
    %443 = vmatprep.subr.mxu0 %v119
    %444 = vmatpush1.msra.mxu0 %v118
    %445 = vmatprep.subr.mxu0 %v123
    %446 = vmatpush1.msra.mxu0 %v122
    %447 = vmatprep.subr.mxu0 %v127
    %448 = vmatpush1.msra.mxu0 %v126
    %449 = vmatprep.subr.mxu0 %v131
    %450 = vmatpush1.msra.mxu0 %v130
    %451 = vmatprep.subr.mxu0 %v135
    %452 = vmatpush1.msra.mxu0 %v134
    %453 = vmatprep.subr.mxu0 %v139
    %454 = vmatpush1.msra.mxu0 %v138
    %455 = vmatprep.subr.mxu0 %v143
    %456 = vmatpush1.msra.mxu0 %v142
    %457 = vmatprep.subr.mxu0 %v147
    %458 = vmatpush1.msra.mxu0 %v146
    %459 = vmatprep.subr.mxu0 %v151
    %460 = vmatpush1.msra.mxu0 %v150
    %461 = vmatprep.subr.mxu0 0.0
    %462 = vmatpush1.msra.mxu0 0.0
    %463 = vmatprep.subr.mxu0 0.0
    %464 = vmatpush1.msra.mxu0 0.0
    %465 = vmatprep.subr.mxu0 0.0
    %466 = vmatpush1.msra.mxu0 0.0
    %467 = vmatprep.subr.mxu0 0.0
    %468 = vmatpush1.msra.mxu0 0.0
    %469 = vmatprep.subr.mxu0 0.0
    %470 = vmatpush1.msra.mxu0 0.0
    %471 = vmatprep.subr.mxu0 0.0
    %472 = vmatpush1.msra.mxu0 0.0
    %473 = vmatprep.subr.mxu0 0.0
    %474 = vmatpush1.msra.mxu0 0.0
    %475 = vmatprep.subr.mxu0 0.0
    %476 = vmatpush1.msra.mxu0 0.0
    %477 = vmatprep.subr.mxu0 0.0
    %478 = vmatpush1.msra.mxu0 0.0
    %479 = vmatprep.subr.mxu0 0.0
    %480 = vmatpush1.msra.mxu0 0.0
    %481 = vmatprep.subr.mxu0 0.0
    %482 = vmatpush1.msra.mxu0 0.0
    %483 = vmatprep.subr.mxu0 0.0
    %484 = vmatpush1.msra.mxu0 0.0
    %485 = vmatprep.subr.mxu0 0.0
    %486 = vmatpush1.msra.mxu0 0.0
    %487 = vmatprep.subr.mxu0 0.0
    %488 = vmatpush1.msra.mxu0 0.0
    %489 = vmatprep.subr.mxu0 0.0
    %490 = vmatpush1.msra.mxu0 0.0
    %491 = vmatprep.subr.mxu0 0.0
    %492 = vmatpush1.msra.mxu0 0.0
    %493 = vmatprep.mubr.f32.mxu0 0.0
    %494 = vmatmul.mubr.f32.gmra.mrb[0].mxu0 %v85
    %v495 = vpop.f32.mrb[0].mxu0
    %v496 = vadd.f32 %v354, %v495
    %v497 = vpop.f32.mrb[0].mxu0
    %v498 = vadd.f32 %v356, %v497
    %499 = vdwg.mxu0
    %v500 = vld [vmem:[%s5] sm:$0xf]
    %v502 = vlaneseq
    %v503 = vshrl.u32 %v502, 7
    %v504 = vsub.s32 0, %v503
    %v505 = vrot.slane %v500, %v504
    %v506 = vlaneseq
    %v507 = vshrl.u32 %v506, 7
    %v508 = vsub.s32 1, %v507
    %v509 = vrot.slane %v500, %v508
    %v510 = vlaneseq
    %v511 = vshrl.u32 %v510, 7
    %v512 = vsub.s32 2, %v511
    %v513 = vrot.slane %v500, %v512
    %v514 = vlaneseq
    %v515 = vshrl.u32 %v514, 7
    %v516 = vsub.s32 3, %v515
    %v517 = vrot.slane %v500, %v516
    %v522 = vadd.f32 %v425, %v505
    %v523 = vadd.f32 %v427, %v509
    %v524 = vadd.f32 %v496, %v513
    %v525 = vadd.f32 %v498, %v517
    %v526 = vxor.u32 %v522, 2147483648
    %v527 = vmul.f32 %v526, 1.442695
    %v528 = vpow.pop %v527
    %v529 = vadd.f32 %v528, 1.0
    %v530 = vrcp.pop %v529
    %v531 = vmul.f32 1.0, %v530
    %v532 = vxor.u32 %v523, 2147483648
    %v533 = vmul.f32 %v532, 1.442695
    %v534 = vpow.pop %v533
    %v535 = vadd.f32 %v534, 1.0
    %v536 = vrcp.pop %v535
    %v537 = vmul.f32 1.0, %v536
    %v538 = vtanh.pop %v524
    %v539 = vxor.u32 %v525, 2147483648
    %v540 = vmul.f32 %v539, 1.442695
    %v541 = vpow.pop %v540
    %v542 = vadd.f32 %v541, 1.0
    %v543 = vrcp.pop %v542
    %v544 = vmul.f32 1.0, %v543
    %v545 = vmul.f32 %v537, %v87
    %v546 = vmul.f32 %v531, %v538
    %v547 = vadd.f32 %v545, %v546
    %v548 = vtanh.pop %v547
    %v549 = vmul.f32 %v544, %v548
    %v550 = vld [vmem:[#allocation7] sm:$0xff]
    %v551 = vld [vmem:[#allocation7 + $0x8] sm:$0xff]
    %v552 = vld [vmem:[#allocation7 + $0x10] sm:$0xff]
    %v553 = vld [vmem:[#allocation7 + $0x18] sm:$0xff]
    %v554 = vld [vmem:[#allocation7 + $0x20] sm:$0xff]
    %v555 = vld [vmem:[#allocation7 + $0x28] sm:$0xff]
    %v556 = vld [vmem:[#allocation7 + $0x30] sm:$0xff]
    %v557 = vld [vmem:[#allocation7 + $0x38] sm:$0xff]
    %v558 = vld [vmem:[#allocation7 + $0x40] sm:$0xff]
    %v559 = vld [vmem:[#allocation7 + $0x48] sm:$0xff]
    %v560 = vld [vmem:[#allocation7 + $0x50] sm:$0xff]
    %v561 = vld [vmem:[#allocation7 + $0x58] sm:$0xff]
    %v562 = vld [vmem:[#allocation7 + $0x60] sm:$0xff]
    %v563 = vld [vmem:[#allocation7 + $0x68] sm:$0xff]
    %v564 = vld [vmem:[#allocation7 + $0x70] sm:$0xff]
    %v565 = vld [vmem:[#allocation7 + $0x78] sm:$0xff]
    %v566 = vld [vmem:[%s7] sm:$0x1]
    %v568 = vlaneseq
    %v569 = vshrl.u32 %v568, 7
    %v570 = vsub.s32 0, %v569
    %v571 = vrot.slane %v566, %v570
    %573 = vmatprep.subr.mxu0 0.0
    %574 = vmatpush1.msra.mxu0 %v550
    %575 = vmatprep.subr.mxu0 0.0
    %576 = vmatpush1.msra.mxu0 %v551
    %577 = vmatprep.subr.mxu0 0.0
    %578 = vmatpush1.msra.mxu0 %v552
    %579 = vmatprep.subr.mxu0 0.0
    %580 = vmatpush1.msra.mxu0 %v553
    %581 = vmatprep.subr.mxu0 0.0
    %582 = vmatpush1.msra.mxu0 %v554
    %583 = vmatprep.subr.mxu0 0.0
    %584 = vmatpush1.msra.mxu0 %v555
    %585 = vmatprep.subr.mxu0 0.0
    %586 = vmatpush1.msra.mxu0 %v556
    %587 = vmatprep.subr.mxu0 0.0
    %588 = vmatpush1.msra.mxu0 %v557
    %589 = vmatprep.subr.mxu0 0.0
    %590 = vmatpush1.msra.mxu0 %v558
    %591 = vmatprep.subr.mxu0 0.0
    %592 = vmatpush1.msra.mxu0 %v559
    %593 = vmatprep.subr.mxu0 0.0
    %594 = vmatpush1.msra.mxu0 %v560
    %595 = vmatprep.subr.mxu0 0.0
    %596 = vmatpush1.msra.mxu0 %v561
    %597 = vmatprep.subr.mxu0 0.0
    %598 = vmatpush1.msra.mxu0 %v562
    %599 = vmatprep.subr.mxu0 0.0
    %600 = vmatpush1.msra.mxu0 %v563
    %601 = vmatprep.subr.mxu0 0.0
    %602 = vmatpush1.msra.mxu0 %v564
    %603 = vmatprep.subr.mxu0 0.0
    %604 = vmatpush1.msra.mxu0 %v565
    %605 = vmatprep.subr.mxu0 0.0
    %606 = vmatpush1.msra.mxu0 0.0
    %607 = vmatprep.subr.mxu0 0.0
    %608 = vmatpush1.msra.mxu0 0.0
    %609 = vmatprep.subr.mxu0 0.0
    %610 = vmatpush1.msra.mxu0 0.0
    %611 = vmatprep.subr.mxu0 0.0
    %612 = vmatpush1.msra.mxu0 0.0
    %613 = vmatprep.subr.mxu0 0.0
    %614 = vmatpush1.msra.mxu0 0.0
    %615 = vmatprep.subr.mxu0 0.0
    %616 = vmatpush1.msra.mxu0 0.0
    %617 = vmatprep.subr.mxu0 0.0
    %618 = vmatpush1.msra.mxu0 0.0
    %619 = vmatprep.subr.mxu0 0.0
    %620 = vmatpush1.msra.mxu0 0.0
    %621 = vmatprep.subr.mxu0 0.0
    %622 = vmatpush1.msra.mxu0 0.0
    %623 = vmatprep.subr.mxu0 0.0
    %624 = vmatpush1.msra.mxu0 0.0
    %625 = vmatprep.subr.mxu0 0.0
    %626 = vmatpush1.msra.mxu0 0.0
    %627 = vmatprep.subr.mxu0 0.0
    %628 = vmatpush1.msra.mxu0 0.0
    %629 = vmatprep.subr.mxu0 0.0
    %630 = vmatpush1.msra.mxu0 0.0
    %631 = vmatprep.subr.mxu0 0.0
    %632 = vmatpush1.msra.mxu0 0.0
    %633 = vmatprep.subr.mxu0 0.0
    %634 = vmatpush1.msra.mxu0 0.0
    %635 = vmatprep.subr.mxu0 0.0
    %636 = vmatpush1.msra.mxu0 0.0
    %637 = vmatprep.mubr.f32.mxu0 0.0
    %638 = vmatmul.mubr.f32.gmra.mrb[0].mxu0 %v549
    %v639 = vpop.f32.mrb[0].mxu0
    %v640 = vadd.f32 %v571, %v639
    %v641 = vpop.f32.mrb[0].mxu0
    %642 = vdwg.mxu0
    %v643 = vtanh.pop %v640
    %v644 = vmul.f32 %v643, 2.5
    %645 = vst [vmem:[%s8] sm:$0x3] %v644
    %646 = vst [vmem:[%s9] sm:$0x3] %v549
    %647 = vst [vmem:[%s10] sm:$0x3] %v547
    // Predicated region
    $region50: #{controller_step_pallas.1} parent=1 // pred_check
      _
    $region51: #{controller_step_pallas.1} parent=1 // pred_check_branch
      %649 = sbr.rel (0) target = $region53
    $region52: #{controller_step_pallas.1} parent=1 // pred_region
      _
    $region53: #{controller_step_pallas.1} parent=1 // pred_fallthru
      _
    // Predicated region
    $region54: #{controller_step_pallas.1} parent=1 // pred_check
      _
    $region55: #{controller_step_pallas.1} parent=1 // pred_check_branch
      %651 = sbr.rel (0) target = $region57
    $region56: #{controller_step_pallas.1} parent=1 // pred_region
      _
    $region57: #{controller_step_pallas.1} parent=1 // pred_fallthru
      _
    // Predicated region
    $region58: #{controller_step_pallas.1} parent=1 // pred_check
      _
    $region59: #{controller_step_pallas.1} parent=1 // pred_check_branch
      %653 = sbr.rel (0) target = $region61
    $region60: #{controller_step_pallas.1} parent=1 // pred_region
      _
    $region61: #{controller_step_pallas.1} parent=1 // pred_fallthru
      _
    // Predicated region
    $region62: #{controller_step_pallas.1} parent=1 // pred_check
      _
    $region63: #{controller_step_pallas.1} parent=1 // pred_check_branch
      %655 = sbr.rel (0) target = $region65
    $region64: #{controller_step_pallas.1} parent=1 // pred_region
      _
    $region65: #{controller_step_pallas.1} parent=1 // pred_fallthru
      _
    // Predicated region
    $region66: #{controller_step_pallas.1} parent=1 // pred_check
      _
    $region67: #{controller_step_pallas.1} parent=1 // pred_check_branch
      %657 = sbr.rel (0) target = $region69
    $region68: #{controller_step_pallas.1} parent=1 // pred_region
      _
    $region69: #{controller_step_pallas.1} parent=1 // pred_fallthru
      _
    // Predicated region
    $region70: #{controller_step_pallas.1} parent=1 // pred_check
      _
    $region71: #{controller_step_pallas.1} parent=1 // pred_check_branch
      %659 = sbr.rel (0) target = $region73
    $region72: #{controller_step_pallas.1} parent=1 // pred_region
      _
    $region73: #{controller_step_pallas.1} parent=1 // pred_fallthru
      _
    %660 = vsyncpa [#allocation3], 1
    %661 = vsyncpa [#allocation5], 1
    %662 = vsyncpa [#allocation8], 1

</llo_original>
